<compile_context>
chip_gen: v5e
topology: v5e:2x2
jax: 0.10.0
libtpu: 0.0.40
codegen_flags: <defaults>
</compile_context>

<pallas_src>
import jax
import jax.numpy as jnp
from jax.experimental import pallas as pl
from jax.experimental.pallas import tpu as pltpu


def _round_up(v, m):
    return (v + m - 1) // m * m


# --------------------------------------------------------------------------
# Kernels
# --------------------------------------------------------------------------
def _make_kernel_accumulate_in_out(compute_dtype):
    """f32-output kernel: accumulate directly into the output block.

    x_ref: (tm, tk)  w_ref: (tk, tn)  b_ref: (1, tn)  o_ref: (tm, tn) f32
    The output BlockSpec ignores the K grid axis, so o_ref stays VMEM
    resident across the whole K reduction.
    """

    def kernel(x_ref, w_ref, b_ref, o_ref):
        k = pl.program_id(2)

        @pl.when(k == 0)
        def _init():
            # Bias seeds the accumulator exactly once.
            o_ref[...] = jnp.broadcast_to(b_ref[...], o_ref.shape)

        x = x_ref[...]
        w = w_ref[...]
        if compute_dtype is not None:
            x = x.astype(compute_dtype)
            w = w.astype(compute_dtype)
        o_ref[...] += jnp.dot(x, w, preferred_element_type=jnp.float32)

    return kernel


def _make_kernel_with_scratch(compute_dtype):
    """Generic kernel for non-f32 outputs: f32 VMEM scratch accumulator."""

    def kernel(x_ref, w_ref, b_ref, o_ref, acc_ref):
        k = pl.program_id(2)

        @pl.when(k == 0)
        def _init():
            acc_ref[...] = jnp.zeros_like(acc_ref)

        x = x_ref[...]
        w = w_ref[...]
        if compute_dtype is not None:
            x = x.astype(compute_dtype)
            w = w.astype(compute_dtype)
        acc_ref[...] += jnp.dot(x, w, preferred_element_type=jnp.float32)

        @pl.when(k == pl.num_programs(2) - 1)
        def _finalize():
            o_ref[...] = (acc_ref[...] + b_ref[...]).astype(o_ref.dtype)

    return kernel


# --------------------------------------------------------------------------
# Wrapper
# --------------------------------------------------------------------------
def expert_forward(x, w, b, *, tm=512, tn=512, tk=1024, compute_dtype=None):
    """Pallas forward for `Expert`: y = x @ w + b.

    x: (B, IN) float32
    w: (IN, OUT) float32   (transposed vs. PyTorch's nn.Linear weight)
    b: (OUT,)  float32
    compute_dtype: optional MXU operand dtype (e.g. jnp.bfloat16); the cast
                   happens per-tile inside the kernel, accumulation stays f32.
    """
    B, IN = x.shape
    IN_w, OUT = w.shape
    assert IN == IN_w, (IN, IN_w)
    out_dtype = x.dtype

    # ---- M tiling: partial edge blocks are fine (masked writes) ------------
    tm = max(8, tm - tm % 8)
    tm_eff = B if B <= tm else tm
    grid_m = pl.cdiv(B, tm_eff)

    # ---- N tiling: tile must be a multiple of 128 or the full extent -------
    tn = max(128, tn - tn % 128)
    tn_eff = OUT if OUT <= tn else tn
    grid_n = pl.cdiv(OUT, tn_eff)

    # v7x has 2 TensorCores sharded over the "parallel" axes; make sure there
    # are at least 2 parallel tiles when OUT is big enough to split.
    if grid_m == 1 and grid_n == 1 and OUT >= 256:
        tn_eff = _round_up(pl.cdiv(OUT, 2), 128)
        grid_n = pl.cdiv(OUT, tn_eff)

    # ---- K tiling: reduction axis must be exact (zero-pad only if needed) --
    if IN <= tk:
        tk_eff, Kp = IN, IN
    else:
        tk_eff = None
        for cand in range(tk - tk % 128, 127, -128):
            if IN % cand == 0:
                tk_eff = cand  # a 128-multiple that divides K: no padding
                break
        if tk_eff is None:
            tk_eff = tk - tk % 128 if tk >= 128 else 128
        Kp = _round_up(IN, tk_eff)
    if Kp != IN:
        # Zero-fill only the reduction axis; garbage K would corrupt outputs.
        x = jnp.pad(x, ((0, 0), (0, Kp - IN)))
        w = jnp.pad(w, ((0, Kp - IN), (0, 0)))
    grid_k = Kp // tk_eff

    b2 = b.reshape(1, OUT).astype(jnp.float32)

    grid = (grid_m, grid_n, grid_k)

    # ---- kernel selection ---------------------------------------------------
    if jnp.dtype(out_dtype) == jnp.float32:
        kernel = _make_kernel_accumulate_in_out(compute_dtype)
        scratch_shapes = []
        scratch_bytes = 0
    else:
        kernel = _make_kernel_with_scratch(compute_dtype)
        scratch_shapes = [pltpu.VMEM((tm_eff, tn_eff), jnp.float32)]
        scratch_bytes = tm_eff * tn_eff * 4

    # ---- VMEM budget (double-buffered ins/outs + scratch), with headroom ----
    in_item = jnp.dtype(x.dtype).itemsize
    out_item = jnp.dtype(out_dtype).itemsize
    vmem_need = (
        2 * (tm_eff * tk_eff + tk_eff * tn_eff) * in_item
        + 2 * tm_eff * tn_eff * out_item
        + 2 * tn_eff * 4
        + scratch_bytes
    )
    # Cap below v7x's 64 MiB per-TC VMEM; floor at the common 32 MiB default.
    vmem_limit = min(max(int(vmem_need * 1.5) + (2 << 20), 32 << 20), 48 << 20)

    cost = pl.CostEstimate(
        flops=2 * B * Kp * OUT,
        transcendentals=0,
        bytes_accessed=(
            x.size * in_item + w.size * in_item + b2.size * 4 + B * OUT * out_item
        ),
    )

    out = pl.pallas_call(
        kernel,
        out_shape=jax.ShapeDtypeStruct((B, OUT), out_dtype),
        grid_spec=pltpu.PrefetchScalarGridSpec(
            num_scalar_prefetch=0,
            grid=grid,
            in_specs=[
                pl.BlockSpec((tm_eff, tk_eff), lambda i, j, k: (i, k)),  # x tile
                pl.BlockSpec((tk_eff, tn_eff), lambda i, j, k: (k, j)),  # W tile
                pl.BlockSpec((1, tn_eff), lambda i, j, k: (0, j)),       # bias
            ],
            out_specs=pl.BlockSpec((tm_eff, tn_eff), lambda i, j, k: (i, j)),
            scratch_shapes=scratch_shapes,
        ),
        compiler_params=pltpu.CompilerParams(
            dimension_semantics=("parallel", "parallel", "arbitrary"),
            vmem_limit_bytes=vmem_limit,
        ),
        cost_estimate=cost,
    )(x, w, b2)

    return out


# --------------------------------------------------------------------------
# Self-test
# --------------------------------------------------------------------------
if __name__ == "__main__":
    # Small shapes consistent with the module: input_size=32, output_size=16, batch=8.
    batch, input_size, output_size = 8, 32, 16

    key = jax.random.PRNGKey(0)
    kx, kw, kb = jax.random.split(key, 3)

    # Deterministic parameter init (mimics nn.Linear's uniform(-1/sqrt(in), 1/sqrt(in))).
    bound = 1.0 / (input_size ** 0.5)
    w = jax.random.uniform(kw, (input_size, output_size), jnp.float32, -bound, bound)
    b = jax.random.uniform(kb, (output_size,), jnp.float32, -bound, bound)
    x = jax.random.normal(kx, (batch, input_size), jnp.float32)

    ref = x @ w + b

    # Full-precision path.
    out = jax.block_until_ready(expert_forward(x, w, b))
    assert out.shape == (batch, output_size)
    assert jnp.allclose(out, ref, atol=1e-5, rtol=1e-5)

    # In-kernel bf16 operand cast path (f32 accumulation); looser tolerance.
    out_bf16 = jax.block_until_ready(
        expert_forward(x, w, b, compute_dtype=jnp.bfloat16)
    )
    assert out_bf16.shape == (batch, output_size)
    assert jnp.allclose(out_bf16, ref, atol=5e-2, rtol=5e-2)

    print("KERNEL_OK")
</pallas_src>

<mosaic_0001>
module attributes {stable_mosaic.version = 11 : i64} {
  func.func @kernel(%arg0: i32, %arg1: i32, %arg2: i32, %arg3: memref<8x32xf32, #tpu.memory_space<vmem>>, %arg4: memref<32x16xf32, #tpu.memory_space<vmem>>, %arg5: memref<1x16xf32, #tpu.memory_space<vmem>>, %arg6: memref<8x16xf32, #tpu.memory_space<vmem>>) attributes {dimension_semantics = [#tpu.dimension_semantics<parallel>, #tpu.dimension_semantics<parallel>, #tpu.dimension_semantics<arbitrary>], iteration_bounds = array<i64: 1, 1, 1>, scalar_prefetch = 0 : i64, scratch_operands = 0 : i64, tpu.core_type = #tpu.core_type<tc>, window_params = [{transform_indices = @transform_0, window_bounds = array<i64: 8, 32>}, {transform_indices = @transform_1, window_bounds = array<i64: 32, 16>}, {transform_indices = @transform_2, window_bounds = array<i64: 1, 16>}, {transform_indices = @transform_3, window_bounds = array<i64: 8, 16>}]} {
    %c0_i32 = arith.constant 0 : i32
    %0 = arith.cmpi eq, %arg2, %c0_i32 : i32
    %1 = arith.extui %0 : i1 to i32
    %c0_i32_0 = arith.constant 0 : i32
    %2 = arith.cmpi ne, %1, %c0_i32_0 : i32
    scf.if %2 {
      %c0_8 = arith.constant 0 : index
      %c0_9 = arith.constant 0 : index
      %9 = vector.load %arg5[%c0_8, %c0_9] : memref<1x16xf32, #tpu.memory_space<vmem>>, vector<1x16xf32>
      %10 = vector.shape_cast %9 : vector<1x16xf32> to vector<1x16xf32>
      %11 = vector.broadcast %10 : vector<1x16xf32> to vector<8x16xf32>
      %c0_10 = arith.constant 0 : index
      %c0_11 = arith.constant 0 : index
      %12 = vector.load %arg6[%c0_10, %c0_11] : memref<8x16xf32, #tpu.memory_space<vmem>>, vector<8x16xf32>
      tpu.vector_store %arg6[%c0_10, %c0_11], %11 {strides = array<i32>} : memref<8x16xf32, #tpu.memory_space<vmem>>, vector<8x16xf32>,
    } else {
    }
    %c0 = arith.constant 0 : index
    %c0_1 = arith.constant 0 : index
    %3 = vector.load %arg3[%c0, %c0_1] : memref<8x32xf32, #tpu.memory_space<vmem>>, vector<8x32xf32>
    %c0_2 = arith.constant 0 : index
    %c0_3 = arith.constant 0 : index
    %4 = vector.load %arg4[%c0_2, %c0_3] : memref<32x16xf32, #tpu.memory_space<vmem>>, vector<32x16xf32>
    %c0_4 = arith.constant 0 : index
    %c0_5 = arith.constant 0 : index
    %5 = vector.load %arg6[%c0_4, %c0_5] : memref<8x16xf32, #tpu.memory_space<vmem>>, vector<8x16xf32>
    %cst = arith.constant dense<0.000000e+00> : vector<8x16xf32>
    %6 = tpu.matmul %3, %4, %cst {dimension_numbers = #tpu.dot_dimension_numbers<[1], [0], [0], [1], [0, 0, 1, 1], [], []>} : vector<8x32xf32>, vector<32x16xf32>, vector<8x16xf32> -> vector<8x16xf32>
    %7 = arith.addf %5, %6 : vector<8x16xf32>
    %c0_6 = arith.constant 0 : index
    %c0_7 = arith.constant 0 : index
    %8 = vector.load %arg6[%c0_6, %c0_7] : memref<8x16xf32, #tpu.memory_space<vmem>>, vector<8x16xf32>
    tpu.vector_store %arg6[%c0_6, %c0_7], %7 {strides = array<i32>} : memref<8x16xf32, #tpu.memory_space<vmem>>, vector<8x16xf32>,
    return
  }
  func.func @transform_0(%arg0: i32, %arg1: i32, %arg2: i32) -> (i32, i32) {
    %c0_i32 = arith.constant 0 : i32
    return %arg0, %arg2 : i32, i32
  }
  func.func @transform_1(%arg0: i32, %arg1: i32, %arg2: i32) -> (i32, i32) {
    %c0_i32 = arith.constant 0 : i32
    return %arg2, %arg1 : i32, i32
  }
  func.func @transform_2(%arg0: i32, %arg1: i32, %arg2: i32) -> (i32, i32) {
    %c0_i32 = arith.constant 0 : i32
    %c0_i32_0 = arith.constant 0 : i32
    return %c0_i32, %arg1 : i32, i32
  }
  func.func @transform_3(%arg0: i32, %arg1: i32, %arg2: i32) -> (i32, i32) {
    %c0_i32 = arith.constant 0 : i32
    return %arg0, %arg1 : i32, i32
  }
}

</mosaic_0001>

<llo_original>
// kernel: tpu_custom_call.1
$region0: #{tpu_custom_call.1}
  #allocation0 [shape = 'u32[]', space=smem, size = 0x4, offset = 0x4, fixed_abs, tag = 'smem constant byte address 0x4 - core index']
  #allocation1 [shape = 'u32[72,128]{1,0:T(1,128)}', space=vmem, size = 0x9000, scoped, tag = 'internal scratch']
  %s0 = inlined_call_operand.vmem [shape: f32[8,32], index: 0, kind: input, shape index: {}]
  %s1 = inlined_call_operand.vmem [shape: f32[32,16], index: 1, kind: input, shape index: {}]
  %s2 = inlined_call_operand.vmem [shape: f32[1,16], index: 2, kind: input, shape index: {}]
  %s3 = inlined_call_operand.hbm [shape: f32[8,16], index: 3, kind: output, shape index: {}]
  %s4 = sld [smem:[#allocation0]]
  $region26: #{tpu_custom_call.1} parent=0
    _
  %s6 = ssub.s32 1, %s4
  %s7 = scalar_select 0, %s6, %s4
  $region1: #{tpu_custom_call.1} parent=0
    #allocation2 [shape = 'u8[4096]{0}', space=vmem, size = 0x1000, scoped, tag = 'output window, operand 0, single buffered']
    #allocation3 [shape = 's32[1]{0}', space=sflag, size = 0x4, scoped, tag = 'scoped memory for tpu_custom_call.1']
    %8 = vsyncpa [#allocation3], 0
    // Predicated region
    $region2: #{tpu_custom_call.1} parent=1 // pred_check
      _
    $region3: #{tpu_custom_call.1} parent=1 // pred_check_branch
      %10 = sbr.rel (0) target = $region5
    $region4: #{tpu_custom_call.1} parent=1 // pred_region
      _
    $region5: #{tpu_custom_call.1} parent=1 // pred_fallthru
      _
    // Predicated region
    $region6: #{tpu_custom_call.1} parent=1 // pred_check
      _
    $region7: #{tpu_custom_call.1} parent=1 // pred_check_branch
      %12 = sbr.rel (0) target = $region9
    $region8: #{tpu_custom_call.1} parent=1 // pred_region
      _
    $region9: #{tpu_custom_call.1} parent=1 // pred_fallthru
      _
    // Predicated region
    $region10: #{tpu_custom_call.1} parent=1 // pred_check
      _
    $region11: #{tpu_custom_call.1} parent=1 // pred_check_branch
      %14 = sbr.rel (0) target = $region13
    $region12: #{tpu_custom_call.1} parent=1 // pred_region
      _
    $region13: #{tpu_custom_call.1} parent=1 // pred_fallthru
      _
    %p15 = scmp.eq.s32.totalorder 0, 0
    // Predicated region
    $region14: #{tpu_custom_call.1} parent=1 // pred_check
      %p16 = pneg %p15
    $region15: #{tpu_custom_call.1} parent=1 // pred_check_branch
      %18 = sbr.rel (%p16) target = $region17
    $region16: #{tpu_custom_call.1} parent=1 // pred_region
      %v19 = vld [vmem:[%s2] sm:$0x1]
      %v21 = vperm.slane %v19, 0
      %vm23 = vcmask 130048
      %24 = vst.msk [vmem:[#allocation2] sm:$0xff] %vm23, %v21
    $region17: #{tpu_custom_call.1} parent=1 // pred_fallthru
      _
    %v25 = vld [vmem:[%s0] sm:$0xff]
    %v26 = vld [vmem:[%s1] sm:$0xff]
    %v27 = vld [vmem:[%s1 + $0x8] sm:$0xff]
    %v28 = vld [vmem:[%s1 + $0x10] sm:$0xff]
    %v29 = vld [vmem:[%s1 + $0x18] sm:$0xff]
    %v30 = vld [vmem:[#allocation2] sm:$0xff]
    %vm31 = vcmask 261120
    %v33 = vsel %vm31, %v25, 0
    %35 = vmatpush.msra.mxu0 0.0
    %36 = vmatpush.msra.mxu0 0.0
    %37 = vmatpush.msra.mxu0 0.0
    %38 = vmatpush.msra.mxu0 0.0
    %39 = vmatpush.msra.mxu0 0.0
    %40 = vmatpush.msra.mxu0 0.0
    %41 = vmatpush.msra.mxu0 0.0
    %42 = vmatpush.msra.mxu0 0.0
    %43 = vmatpush.msra.mxu0 0.0
    %44 = vmatpush.msra.mxu0 0.0
    %45 = vmatpush.msra.mxu0 0.0
    %46 = vmatpush.msra.mxu0 0.0
    %47 = vmatpush.msra.mxu0 %v29
    %48 = vmatpush.msra.mxu0 %v28
    %49 = vmatpush.msra.mxu0 %v27
    %50 = vmatpush.msra.mxu0 %v26
    %51 = vmatmul.f32.gmra.mxu0 %v33
    %v52 = vpop.f32.mrf.mxu0
    %v53 = vadd.f32 0.0, %v52
    %54 = vdwg.mxu0
    %v55 = vadd.f32 %v30, %v53
    %vm56 = vcmask 130048
    %57 = vst.msk [vmem:[#allocation2] sm:$0xff] %vm56, %v55
    // Predicated region
    $region18: #{tpu_custom_call.1} parent=1 // pred_check
      _
    $region19: #{tpu_custom_call.1} parent=1 // pred_check_branch
      %59 = sbr.rel (0) target = $region21
    $region20: #{tpu_custom_call.1} parent=1 // pred_region
      %61 = vsyncadd [#allocation3], 0
      %s63 = sshll.u32 [#allocation2], 4
      %s64 = int_to_ptr.vmem [resolvable:$true] %s63
      %s65 = sshll.u32 %s3, 4
      %s66 = int_to_ptr.hbm [resolvable:$true] %s65
      %68 = dma.vmem_to_hbm [thread:$0]  %s64, 128, %s66, [#allocation3]
    $region21: #{tpu_custom_call.1} parent=1 // pred_fallthru
      _
    // Predicated region
    $region22: #{tpu_custom_call.1} parent=1 // pred_check
      _
    $region23: #{tpu_custom_call.1} parent=1 // pred_check_branch
      %70 = sbr.rel (0) target = $region25
    $region24: #{tpu_custom_call.1} parent=1 // pred_region
      %72 = dma.done [#allocation3], 128
    $region25: #{tpu_custom_call.1} parent=1 // pred_fallthru
      _
    %73 = vsyncpa [#allocation3], 1

</llo_original>
